<compile_context>
chip_gen: v5e
topology: v5e:2x2
jax: 0.10.0
libtpu: 0.0.40
codegen_flags: <defaults>
</compile_context>

<pallas_src>
import functools

import jax
import jax.numpy as jnp
from jax.experimental import pallas as pl
from jax.experimental.pallas import tpu as pltpu

_LANE = 128  # vreg lane width


def _round_up(n, m):
    return (n + m - 1) // m * m


def _mlp_kernel(x_ref, w1_ref, b1_ref, w2_ref, b2_ref, w3_ref, b3_ref, o_ref):
    # In-kernel f32 -> bf16 cast of the activation tile (VPU has plenty of slack).
    x = x_ref[...].astype(w1_ref.dtype)
    # Layer 1: Linear + ReLU  (bf16 MXU matmul, f32 accumulate + f32 elementwise)
    h1 = jnp.dot(x, w1_ref[...], preferred_element_type=jnp.float32)
    h1 = jnp.maximum(h1 + b1_ref[...], 0.0)
    # Layer 2: Linear + ReLU
    h2 = jnp.dot(h1.astype(w2_ref.dtype), w2_ref[...],
                 preferred_element_type=jnp.float32)
    h2 = jnp.maximum(h2 + b2_ref[...], 0.0)
    # Layer 3: Linear (logits, class dim lane-padded to 128)
    out = jnp.dot(h2.astype(w3_ref.dtype), w3_ref[...],
                  preferred_element_type=jnp.float32)
    o_ref[...] = (out + b3_ref[...]).astype(o_ref.dtype)


def prepare_params(params, *, compute_dtype=jnp.bfloat16):
    """One-time preprocessing of the (in, out)-layout f32 params:
    bf16 weights, f32 biases, E and C dims zero-padded to multiples of 128 lanes.
    Call this once, reuse the result for every forward call."""
    w1, b1, w2, b2, w3, b3 = (params[k] for k in ("w1", "b1", "w2", "b2", "w3", "b3"))
    E = w1.shape[0]
    C = w3.shape[1]
    Ep = _round_up(E, _LANE)
    Cp = _round_up(C, _LANE)
    if Ep != E:  # extra zero input features contribute nothing to the contraction
        w1 = jnp.pad(w1, ((0, Ep - E), (0, 0)))
    if Cp != C:  # lane-dense last matmul + unmasked output stores
        w3 = jnp.pad(w3, ((0, 0), (0, Cp - C)))
        b3 = jnp.pad(b3, ((0, 0), (0, Cp - C)))
    return {
        "w1": w1.astype(compute_dtype), "b1": b1.astype(jnp.float32),
        "w2": w2.astype(compute_dtype), "b2": b2.astype(jnp.float32),
        "w3": w3.astype(compute_dtype), "b3": b3.astype(jnp.float32),
    }


@functools.partial(jax.jit, static_argnames=("num_classes", "tile_b", "out_dtype"))
def twitter_model_forward(x, prepared, *, num_classes, tile_b=1024,
                          out_dtype=jnp.bfloat16):
    """Fused MLP forward.

    x:        (B, example_size) float32
    prepared: output of prepare_params()
    Returns (B, num_classes) logits in `out_dtype`.
    """
    w1, b1, w2, b2, w3, b3 = (prepared[k]
                              for k in ("w1", "b1", "w2", "b2", "w3", "b3"))
    B, E = x.shape
    Ep, H = w1.shape
    Cp = w3.shape[1]
    C = num_classes

    assert tile_b % 16 == 0, "tile_b must be a multiple of 16 (bf16 sublane packing)"
    # Small-batch guard: never pad a tiny batch up to a full tile.
    tile_b = min(tile_b, _round_up(B, 16))

    # Lane-pad the feature dim of x to match the padded w1 (dense layer-1 MXU use).
    if Ep != E:
        x = jnp.pad(x, ((0, 0), (0, Ep - E)))
    # Row-pad the batch to a multiple of the tile.
    Bp = _round_up(B, tile_b)
    if Bp != B:
        x = jnp.pad(x, ((0, Bp - B), (0, 0)))

    grid = (Bp // tile_b,)

    weight_bytes = sum(a.size * a.dtype.itemsize for a in (w1, w2, w3, b1, b2, b3))
    out_itemsize = jnp.dtype(out_dtype).itemsize
    cost = pl.CostEstimate(
        flops=2 * Bp * (Ep * H + H * H + H * Cp),
        transcendentals=0,
        bytes_accessed=(x.size * x.dtype.itemsize
                        + weight_bytes
                        + Bp * Cp * out_itemsize),
    )

    out = pl.pallas_call(
        _mlp_kernel,
        out_shape=jax.ShapeDtypeStruct((Bp, Cp), out_dtype),
        grid=grid,
        in_specs=[
            pl.BlockSpec((tile_b, Ep), lambda i: (i, 0)),   # x tile (pipelined, f32)
            pl.BlockSpec((Ep, H), lambda i: (0, 0)),        # w1 (VMEM-resident, bf16)
            pl.BlockSpec((1, H), lambda i: (0, 0)),         # b1 (f32)
            pl.BlockSpec((H, H), lambda i: (0, 0)),         # w2
            pl.BlockSpec((1, H), lambda i: (0, 0)),         # b2
            pl.BlockSpec((H, Cp), lambda i: (0, 0)),        # w3 (lane-padded)
            pl.BlockSpec((1, Cp), lambda i: (0, 0)),        # b3 (lane-padded)
        ],
        out_specs=pl.BlockSpec((tile_b, Cp), lambda i: (i, 0)),
        compiler_params=pltpu.CompilerParams(
            # batch axis is embarrassingly parallel; VMEM use at tile_b=1024 is ~5 MiB,
            # well inside the scoped default on v5e/v6e/v7x, so no vmem_limit override.
            dimension_semantics=("parallel",),
        ),
        cost_estimate=cost,
    )(x, w1, b1, w2, b2, w3, b3)

    # Strip batch / class padding.
    return out[:B, :C]


def init_params(key, example_size, num_classes, hidden=256):
    """Matches the PyTorch module's init_weights(): weights ~ N(0, 1/sqrt(fan_in)),
    biases zero.  Weights stored as (in, out)."""
    k1, k2, k3 = jax.random.split(key, 3)
    w1 = jax.random.normal(k1, (example_size, hidden), jnp.float32) / jnp.sqrt(
        jnp.float32(example_size))
    w2 = jax.random.normal(k2, (hidden, hidden), jnp.float32) / jnp.sqrt(
        jnp.float32(hidden))
    w3 = jax.random.normal(k3, (hidden, num_classes), jnp.float32) / jnp.sqrt(
        jnp.float32(hidden))
    return {
        "w1": w1, "b1": jnp.zeros((1, hidden), jnp.float32),
        "w2": w2, "b2": jnp.zeros((1, hidden), jnp.float32),
        "w3": w3, "b3": jnp.zeros((1, num_classes), jnp.float32),
    }


def _reference_forward(x, p, compute_dtype=jnp.bfloat16):
    """Plain-JAX reference using the same bf16-matmul / f32-accumulate recipe."""
    xc = x.astype(compute_dtype)
    w1 = p["w1"].astype(compute_dtype)
    w2 = p["w2"].astype(compute_dtype)
    w3 = p["w3"].astype(compute_dtype)
    h1 = jnp.maximum(
        jnp.dot(xc, w1, preferred_element_type=jnp.float32) + p["b1"], 0.0)
    h2 = jnp.maximum(
        jnp.dot(h1.astype(compute_dtype), w2, preferred_element_type=jnp.float32)
        + p["b2"], 0.0)
    return (jnp.dot(h2.astype(compute_dtype), w3, preferred_element_type=jnp.float32)
            + p["b3"])


if __name__ == "__main__":
    key = jax.random.PRNGKey(0)
    k_x, k_x2, k_p, k_b1, k_b2, k_b3 = jax.random.split(key, 6)

    batch = 8
    example_size = 32
    num_classes = 10

    x = jax.random.normal(k_x, (batch, example_size), jnp.float32)
    params = init_params(k_p, example_size, num_classes)
    # Test-only: use non-zero biases so the bias-add path is actually exercised
    # (the PyTorch init zeroes them, which would hide bias bugs).
    params["b1"] = 0.1 * jax.random.normal(k_b1, (1, 256), jnp.float32)
    params["b2"] = 0.1 * jax.random.normal(k_b2, (1, 256), jnp.float32)
    params["b3"] = 0.1 * jax.random.normal(k_b3, (1, num_classes), jnp.float32)

    prepared = prepare_params(params)

    # 1) Small batch, f32 output (tight tolerance vs bf16-matmul reference).
    out_f32 = twitter_model_forward(x, prepared, num_classes=num_classes,
                                    out_dtype=jnp.float32)
    out_f32 = jax.block_until_ready(out_f32)
    ref = _reference_forward(x, params)
    assert out_f32.shape == (batch, num_classes)
    assert jnp.allclose(out_f32, ref, atol=2e-3, rtol=2e-3), (
        f"max abs err {jnp.max(jnp.abs(out_f32 - ref))}")

    # 2) Small batch, default bf16 output (looser tolerance due to final bf16 cast).
    out_bf16 = twitter_model_forward(x, prepared, num_classes=num_classes)
    out_bf16 = jax.block_until_ready(out_bf16)
    assert out_bf16.dtype == jnp.bfloat16
    assert jnp.allclose(out_bf16.astype(jnp.float32), ref, atol=2e-2, rtol=2e-2), (
        f"max abs err {jnp.max(jnp.abs(out_bf16.astype(jnp.float32) - ref))}")

    # 3) Larger ragged batch with a small explicit tile to exercise the multi-step
    #    pipelined grid (+ batch padding path).
    batch2 = 200
    x2 = jax.random.normal(k_x2, (batch2, example_size), jnp.float32)
    out2 = twitter_model_forward(x2, prepared, num_classes=num_classes,
                                 tile_b=64, out_dtype=jnp.float32)
    out2 = jax.block_until_ready(out2)
    ref2 = _reference_forward(x2, params)
    assert out2.shape == (batch2, num_classes)
    assert jnp.allclose(out2, ref2, atol=2e-3, rtol=2e-3), (
        f"max abs err {jnp.max(jnp.abs(out2 - ref2))}")

    print("KERNEL_OK")
</pallas_src>

<mosaic_0001>
module attributes {stable_mosaic.version = 11 : i64} {
  func.func @_mlp_kernel(%arg0: i32, %arg1: memref<16x128xf32, #tpu.memory_space<vmem>>, %arg2: memref<128x256xbf16, #tpu.memory_space<vmem>>, %arg3: memref<1x256xf32, #tpu.memory_space<vmem>>, %arg4: memref<256x256xbf16, #tpu.memory_space<vmem>>, %arg5: memref<1x256xf32, #tpu.memory_space<vmem>>, %arg6: memref<256x128xbf16, #tpu.memory_space<vmem>>, %arg7: memref<1x128xf32, #tpu.memory_space<vmem>>, %arg8: memref<16x128xf32, #tpu.memory_space<vmem>>) attributes {dimension_semantics = [#tpu.dimension_semantics<parallel>], iteration_bounds = array<i64: 1>, scalar_prefetch = 0 : i64, scratch_operands = 0 : i64, tpu.core_type = #tpu.core_type<tc>, window_params = [{transform_indices = @transform_0, window_bounds = array<i64: 16, 128>}, {pipeline_mode = #tpu.pipeline_mode<synchronous>, transform_indices = @transform_1, window_bounds = array<i64: 128, 256>}, {pipeline_mode = #tpu.pipeline_mode<synchronous>, transform_indices = @transform_2, window_bounds = array<i64: 1, 256>}, {pipeline_mode = #tpu.pipeline_mode<synchronous>, transform_indices = @transform_3, window_bounds = array<i64: 256, 256>}, {pipeline_mode = #tpu.pipeline_mode<synchronous>, transform_indices = @transform_4, window_bounds = array<i64: 1, 256>}, {pipeline_mode = #tpu.pipeline_mode<synchronous>, transform_indices = @transform_5, window_bounds = array<i64: 256, 128>}, {pipeline_mode = #tpu.pipeline_mode<synchronous>, transform_indices = @transform_6, window_bounds = array<i64: 1, 128>}, {transform_indices = @transform_7, window_bounds = array<i64: 16, 128>}]} {
    %c0 = arith.constant 0 : index
    %c0_0 = arith.constant 0 : index
    %0 = vector.load %arg1[%c0, %c0_0] : memref<16x128xf32, #tpu.memory_space<vmem>>, vector<16x128xf32>
    %1 = arith.truncf %0 : vector<16x128xf32> to vector<16x128xbf16>
    %c0_1 = arith.constant 0 : index
    %c0_2 = arith.constant 0 : index
    %2 = vector.load %arg2[%c0_1, %c0_2] : memref<128x256xbf16, #tpu.memory_space<vmem>>, vector<128x256xbf16>
    %cst = arith.constant dense<0.000000e+00> : vector<16x256xf32>
    %3 = tpu.matmul %1, %2, %cst {dimension_numbers = #tpu.dot_dimension_numbers<[1], [0], [0], [1], [0, 0, 1, 1], [], []>} : vector<16x128xbf16>, vector<128x256xbf16>, vector<16x256xf32> -> vector<16x256xf32>
    %c0_3 = arith.constant 0 : index
    %c0_4 = arith.constant 0 : index
    %4 = vector.load %arg3[%c0_3, %c0_4] : memref<1x256xf32, #tpu.memory_space<vmem>>, vector<1x256xf32>
    %5 = vector.broadcast %4 : vector<1x256xf32> to vector<16x256xf32>
    %6 = arith.addf %3, %5 : vector<16x256xf32>
    %cst_5 = arith.constant 0.000000e+00 : f32
    %7 = vector.broadcast %cst_5 : f32 to vector<16x256xf32>
    %8 = arith.maximumf %6, %7 : vector<16x256xf32>
    %9 = arith.truncf %8 : vector<16x256xf32> to vector<16x256xbf16>
    %c0_6 = arith.constant 0 : index
    %c0_7 = arith.constant 0 : index
    %10 = vector.load %arg4[%c0_6, %c0_7] : memref<256x256xbf16, #tpu.memory_space<vmem>>, vector<256x256xbf16>
    %cst_8 = arith.constant dense<0.000000e+00> : vector<16x256xf32>
    %11 = tpu.matmul %9, %10, %cst_8 {dimension_numbers = #tpu.dot_dimension_numbers<[1], [0], [0], [1], [0, 0, 1, 1], [], []>} : vector<16x256xbf16>, vector<256x256xbf16>, vector<16x256xf32> -> vector<16x256xf32>
    %c0_9 = arith.constant 0 : index
    %c0_10 = arith.constant 0 : index
    %12 = vector.load %arg5[%c0_9, %c0_10] : memref<1x256xf32, #tpu.memory_space<vmem>>, vector<1x256xf32>
    %13 = vector.broadcast %12 : vector<1x256xf32> to vector<16x256xf32>
    %14 = arith.addf %11, %13 : vector<16x256xf32>
    %cst_11 = arith.constant 0.000000e+00 : f32
    %15 = vector.broadcast %cst_11 : f32 to vector<16x256xf32>
    %16 = arith.maximumf %14, %15 : vector<16x256xf32>
    %17 = arith.truncf %16 : vector<16x256xf32> to vector<16x256xbf16>
    %c0_12 = arith.constant 0 : index
    %c0_13 = arith.constant 0 : index
    %18 = vector.load %arg6[%c0_12, %c0_13] : memref<256x128xbf16, #tpu.memory_space<vmem>>, vector<256x128xbf16>
    %cst_14 = arith.constant dense<0.000000e+00> : vector<16x128xf32>
    %19 = tpu.matmul %17, %18, %cst_14 {dimension_numbers = #tpu.dot_dimension_numbers<[1], [0], [0], [1], [0, 0, 1, 1], [], []>} : vector<16x256xbf16>, vector<256x128xbf16>, vector<16x128xf32> -> vector<16x128xf32>
    %c0_15 = arith.constant 0 : index
    %c0_16 = arith.constant 0 : index
    %20 = vector.load %arg7[%c0_15, %c0_16] : memref<1x128xf32, #tpu.memory_space<vmem>>, vector<1x128xf32>
    %21 = vector.broadcast %20 : vector<1x128xf32> to vector<16x128xf32>
    %22 = arith.addf %19, %21 : vector<16x128xf32>
    %c0_17 = arith.constant 0 : index
    %c0_18 = arith.constant 0 : index
    %23 = vector.load %arg8[%c0_17, %c0_18] : memref<16x128xf32, #tpu.memory_space<vmem>>, vector<16x128xf32>
    tpu.vector_store %arg8[%c0_17, %c0_18], %22 {strides = array<i32>} : memref<16x128xf32, #tpu.memory_space<vmem>>, vector<16x128xf32>,
    return
  }
  func.func @transform_0(%arg0: i32) -> (i32, i32) {
    %c0_i32 = arith.constant 0 : i32
    %c0_i32_0 = arith.constant 0 : i32
    return %arg0, %c0_i32 : i32, i32
  }
  func.func @transform_1(%arg0: i32) -> (i32, i32) {
    %c0_i32 = arith.constant 0 : i32
    %c0_i32_0 = arith.constant 0 : i32
    %c0_i32_1 = arith.constant 0 : i32
    return %c0_i32, %c0_i32_0 : i32, i32
  }
  func.func @transform_2(%arg0: i32) -> (i32, i32) {
    %c0_i32 = arith.constant 0 : i32
    %c0_i32_0 = arith.constant 0 : i32
    %c0_i32_1 = arith.constant 0 : i32
    return %c0_i32, %c0_i32_0 : i32, i32
  }
  func.func @transform_3(%arg0: i32) -> (i32, i32) {
    %c0_i32 = arith.constant 0 : i32
    %c0_i32_0 = arith.constant 0 : i32
    %c0_i32_1 = arith.constant 0 : i32
    return %c0_i32, %c0_i32_0 : i32, i32
  }
  func.func @transform_4(%arg0: i32) -> (i32, i32) {
    %c0_i32 = arith.constant 0 : i32
    %c0_i32_0 = arith.constant 0 : i32
    %c0_i32_1 = arith.constant 0 : i32
    return %c0_i32, %c0_i32_0 : i32, i32
  }
  func.func @transform_5(%arg0: i32) -> (i32, i32) {
    %c0_i32 = arith.constant 0 : i32
    %c0_i32_0 = arith.constant 0 : i32
    %c0_i32_1 = arith.constant 0 : i32
    return %c0_i32, %c0_i32_0 : i32, i32
  }
  func.func @transform_6(%arg0: i32) -> (i32, i32) {
    %c0_i32 = arith.constant 0 : i32
    %c0_i32_0 = arith.constant 0 : i32
    %c0_i32_1 = arith.constant 0 : i32
    return %c0_i32, %c0_i32_0 : i32, i32
  }
  func.func @transform_7(%arg0: i32) -> (i32, i32) {
    %c0_i32 = arith.constant 0 : i32
    %c0_i32_0 = arith.constant 0 : i32
    return %arg0, %c0_i32 : i32, i32
  }
}

</mosaic_0001>

<llo_original>
// kernel: twitter_model_forward.1
$region0: #{twitter_model_forward.1}
  #allocation0 [shape = 'u32[]', space=smem, size = 0x4, offset = 0x4, fixed_abs, tag = 'smem constant byte address 0x4 - core index']
  #allocation1 [shape = 'u32[72,128]{1,0:T(1,128)}', space=vmem, size = 0x9000, scoped, tag = 'internal scratch']
  %s0 = inlined_call_operand.vmem [shape: f32[16,128], index: 0, kind: input, shape index: {}]
  %s1 = inlined_call_operand.hbm [shape: bf16[128,256], index: 1, kind: input, shape index: {}]
  %s2 = inlined_call_operand.vmem [shape: f32[1,256], index: 2, kind: input, shape index: {}]
  %s3 = inlined_call_operand.hbm [shape: bf16[256,256], index: 3, kind: input, shape index: {}]
  %s4 = inlined_call_operand.vmem [shape: f32[1,256], index: 4, kind: input, shape index: {}]
  %s5 = inlined_call_operand.hbm [shape: bf16[256,128], index: 5, kind: input, shape index: {}]
  %s6 = inlined_call_operand.vmem [shape: f32[1,128], index: 6, kind: input, shape index: {}]
  %s7 = inlined_call_operand.vmem [shape: f32[16,128], index: 7, kind: output, shape index: {}]
  %s8 = sld [smem:[#allocation0]]
  $region50: #{twitter_model_forward.1} parent=0
    _
  %s10 = ssub.s32 1, %s8
  %s11 = scalar_select 0, %s10, %s8
  $region1: #{twitter_model_forward.1} parent=0
    #allocation2 [shape = 'u8[65536]{0}', space=vmem, size = 0x10000, scoped, tag = 'input window, operand 1, single buffered']
    #allocation3 [shape = 's32[1]{0}', space=sflag, size = 0x4, scoped, tag = 'scoped memory for twitter_model_forward.1']
    #allocation4 [shape = 'u8[131072]{0}', space=vmem, size = 0x20000, scoped, tag = 'input window, operand 3, single buffered']
    #allocation5 [shape = 's32[1]{0}', space=sflag, size = 0x4, scoped, tag = 'scoped memory for twitter_model_forward.1']
    #allocation6 [shape = 'u8[65536]{0}', space=vmem, size = 0x10000, scoped, tag = 'input window, operand 5, single buffered']
    %12 = vsyncpa [#allocation3], 0
    %13 = vsyncpa [#allocation5], 0
    // Predicated region
    $region2: #{twitter_model_forward.1} parent=1 // pred_check
      _
    $region3: #{twitter_model_forward.1} parent=1 // pred_check_branch
      %15 = sbr.rel (0) target = $region5
    $region4: #{twitter_model_forward.1} parent=1 // pred_region
      _
    $region5: #{twitter_model_forward.1} parent=1 // pred_fallthru
      _
    // Predicated region
    $region6: #{twitter_model_forward.1} parent=1 // pred_check
      _
    $region7: #{twitter_model_forward.1} parent=1 // pred_check_branch
      %17 = sbr.rel (0) target = $region9
    $region8: #{twitter_model_forward.1} parent=1 // pred_region
      %19 = vsyncadd [#allocation3], 0
      %s20 = sshll.u32 %s1, 4
      %s21 = int_to_ptr.hbm [resolvable:$true] %s20
      %s22 = sshll.u32 [#allocation2], 4
      %s23 = int_to_ptr.vmem [resolvable:$true] %s22
      %28 = dma.hbm_to_vmem [thread:$0]  %s21, 2048, %s23, [#allocation3], 128, 128, 8
    $region9: #{twitter_model_forward.1} parent=1 // pred_fallthru
      _
    // Predicated region
    $region10: #{twitter_model_forward.1} parent=1 // pred_check
      _
    $region11: #{twitter_model_forward.1} parent=1 // pred_check_branch
      %30 = sbr.rel (0) target = $region13
    $region12: #{twitter_model_forward.1} parent=1 // pred_region
      _
    $region13: #{twitter_model_forward.1} parent=1 // pred_fallthru
      _
    // Predicated region
    $region14: #{twitter_model_forward.1} parent=1 // pred_check
      _
    $region15: #{twitter_model_forward.1} parent=1 // pred_check_branch
      %32 = sbr.rel (0) target = $region17
    $region16: #{twitter_model_forward.1} parent=1 // pred_region
      %34 = vsyncadd [#allocation5], 0
      %s35 = sshll.u32 %s3, 4
      %s36 = int_to_ptr.hbm [resolvable:$true] %s35
      %s37 = sshll.u32 [#allocation4], 4
      %s38 = int_to_ptr.vmem [resolvable:$true] %s37
      %43 = dma.hbm_to_vmem [thread:$0]  %s36, 4096, %s38, [#allocation5], 128, 128, 8
    $region17: #{twitter_model_forward.1} parent=1 // pred_fallthru
      _
    // Predicated region
    $region18: #{twitter_model_forward.1} parent=1 // pred_check
      _
    $region19: #{twitter_model_forward.1} parent=1 // pred_check_branch
      %45 = sbr.rel (0) target = $region21
    $region20: #{twitter_model_forward.1} parent=1 // pred_region
      _
    $region21: #{twitter_model_forward.1} parent=1 // pred_fallthru
      _
    // Predicated region
    $region22: #{twitter_model_forward.1} parent=1 // pred_check
      _
    $region23: #{twitter_model_forward.1} parent=1 // pred_check_branch
      %47 = sbr.rel (0) target = $region25
    $region24: #{twitter_model_forward.1} parent=1 // pred_region
      %49 = vsyncadd [#allocation5], 0
      %s50 = sshll.u32 %s5, 4
      %s51 = int_to_ptr.hbm [resolvable:$true] %s50
      %s52 = sshll.u32 [#allocation6], 4
      %s53 = int_to_ptr.vmem [resolvable:$true] %s52
      %58 = dma.hbm_to_vmem [thread:$0]  %s51, 2048, %s53, [#allocation5], 64, 64, 4
    $region25: #{twitter_model_forward.1} parent=1 // pred_fallthru
      _
    // Predicated region
    $region26: #{twitter_model_forward.1} parent=1 // pred_check
      _
    $region27: #{twitter_model_forward.1} parent=1 // pred_check_branch
      %60 = sbr.rel (0) target = $region29
    $region28: #{twitter_model_forward.1} parent=1 // pred_region
      _
    $region29: #{twitter_model_forward.1} parent=1 // pred_fallthru
      _
    // Predicated region
    $region30: #{twitter_model_forward.1} parent=1 // pred_check
      _
    $region31: #{twitter_model_forward.1} parent=1 // pred_check_branch
      %62 = sbr.rel (0) target = $region33
    $region32: #{twitter_model_forward.1} parent=1 // pred_region
      %64 = dma.done [#allocation3], 2048
    $region33: #{twitter_model_forward.1} parent=1 // pred_fallthru
      _
    // Predicated region
    $region34: #{twitter_model_forward.1} parent=1 // pred_check
      _
    $region35: #{twitter_model_forward.1} parent=1 // pred_check_branch
      %66 = sbr.rel (0) target = $region37
    $region36: #{twitter_model_forward.1} parent=1 // pred_region
      %68 = dma.done [#allocation5], 4096
    $region37: #{twitter_model_forward.1} parent=1 // pred_fallthru
      _
    // Predicated region
    $region38: #{twitter_model_forward.1} parent=1 // pred_check
      _
    $region39: #{twitter_model_forward.1} parent=1 // pred_check_branch
      %70 = sbr.rel (0) target = $region41
    $region40: #{twitter_model_forward.1} parent=1 // pred_region
      %72 = dma.done [#allocation5], 2048
    $region41: #{twitter_model_forward.1} parent=1 // pred_fallthru
      _
    %v73 = vld [vmem:[%s0] sm:$0xff]
    %v74 = vld [vmem:[%s0 + $0x8] sm:$0xff]
    %v75 = vpack.c.bf16 %v74, %v73
    %v76 = vld [vmem:[#allocation2] sm:$0xff]
    %v77 = vld [vmem:[#allocation2 + $0x8] sm:$0xff]
    %v78 = vld [vmem:[#allocation2 + $0x10] sm:$0xff]
    %v79 = vld [vmem:[#allocation2 + $0x18] sm:$0xff]
    %v80 = vld [vmem:[#allocation2 + $0x20] sm:$0xff]
    %v81 = vld [vmem:[#allocation2 + $0x28] sm:$0xff]
    %v82 = vld [vmem:[#allocation2 + $0x30] sm:$0xff]
    %v83 = vld [vmem:[#allocation2 + $0x38] sm:$0xff]
    %v84 = vld [vmem:[#allocation2 + $0x40] sm:$0xff]
    %v85 = vld [vmem:[#allocation2 + $0x48] sm:$0xff]
    %v86 = vld [vmem:[#allocation2 + $0x50] sm:$0xff]
    %v87 = vld [vmem:[#allocation2 + $0x58] sm:$0xff]
    %v88 = vld [vmem:[#allocation2 + $0x60] sm:$0xff]
    %v89 = vld [vmem:[#allocation2 + $0x68] sm:$0xff]
    %v90 = vld [vmem:[#allocation2 + $0x70] sm:$0xff]
    %v91 = vld [vmem:[#allocation2 + $0x78] sm:$0xff]
    %v92 = vld [vmem:[%s2] sm:$0x3]
    %v94 = vperm.slane %v92, 0
    %v95 = vperm.slane %v92, 1
    %v114 = vunpack.c.l.b16 %v76
    %v115 = vunpack.c.h.b16 %v76
    %v116 = vunpack.c.l.b16 %v77
    %v117 = vunpack.c.h.b16 %v77
    %v118 = vunpack.c.l.b16 %v78
    %v119 = vunpack.c.h.b16 %v78
    %v120 = vunpack.c.l.b16 %v79
    %v121 = vunpack.c.h.b16 %v79
    %v122 = vunpack.c.l.b16 %v80
    %v123 = vunpack.c.h.b16 %v80
    %v124 = vunpack.c.l.b16 %v81
    %v125 = vunpack.c.h.b16 %v81
    %v126 = vunpack.c.l.b16 %v82
    %v127 = vunpack.c.h.b16 %v82
    %v128 = vunpack.c.l.b16 %v83
    %v129 = vunpack.c.h.b16 %v83
    %v130 = vunpack.c.l.b16 %v84
    %v131 = vunpack.c.h.b16 %v84
    %v132 = vunpack.c.l.b16 %v85
    %v133 = vunpack.c.h.b16 %v85
    %v134 = vunpack.c.l.b16 %v86
    %v135 = vunpack.c.h.b16 %v86
    %v136 = vunpack.c.l.b16 %v87
    %v137 = vunpack.c.h.b16 %v87
    %v138 = vunpack.c.l.b16 %v88
    %v139 = vunpack.c.h.b16 %v88
    %v140 = vunpack.c.l.b16 %v89
    %v141 = vunpack.c.h.b16 %v89
    %v142 = vunpack.c.l.b16 %v90
    %v143 = vunpack.c.h.b16 %v90
    %v144 = vunpack.c.l.b16 %v91
    %v145 = vunpack.c.h.b16 %v91
    %v146 = vpack.c.b16 %v116, %v114
    %v147 = vpack.c.b16 %v117, %v115
    %v148 = vpack.c.b16 %v120, %v118
    %v149 = vpack.c.b16 %v121, %v119
    %v150 = vpack.c.b16 %v124, %v122
    %v151 = vpack.c.b16 %v125, %v123
    %v152 = vpack.c.b16 %v128, %v126
    %v153 = vpack.c.b16 %v129, %v127
    %v154 = vpack.c.b16 %v132, %v130
    %v155 = vpack.c.b16 %v133, %v131
    %v156 = vpack.c.b16 %v136, %v134
    %v157 = vpack.c.b16 %v137, %v135
    %v158 = vpack.c.b16 %v140, %v138
    %v159 = vpack.c.b16 %v141, %v139
    %v160 = vpack.c.b16 %v144, %v142
    %v161 = vpack.c.b16 %v145, %v143
    %178 = vmatpush.bf16.msra.mxu0 %v160
    %179 = vmatpush.bf16.msra.mxu0 %v158
    %180 = vmatpush.bf16.msra.mxu0 %v156
    %181 = vmatpush.bf16.msra.mxu0 %v154
    %182 = vmatpush.bf16.msra.mxu0 %v152
    %183 = vmatpush.bf16.msra.mxu0 %v150
    %184 = vmatpush.bf16.msra.mxu0 %v148
    %185 = vmatpush.bf16.msra.mxu0 %v146
    %186 = vmatmul.bf16.gmra.mxu0 %v75
    %v187 = vpop.f32.mrf.mxu0
    %v188 = vadd.f32 %v94, %v187
    %v189 = vpop.f32.mrf.mxu0
    %v190 = vadd.f32 %v94, %v189
    %191 = vdwg.mxu0
    %192 = vmatpush.bf16.msra.mxu0 %v161
    %193 = vmatpush.bf16.msra.mxu0 %v159
    %194 = vmatpush.bf16.msra.mxu0 %v157
    %195 = vmatpush.bf16.msra.mxu0 %v155
    %196 = vmatpush.bf16.msra.mxu0 %v153
    %197 = vmatpush.bf16.msra.mxu0 %v151
    %198 = vmatpush.bf16.msra.mxu0 %v149
    %199 = vmatpush.bf16.msra.mxu0 %v147
    %200 = vmatmul.bf16.gmra.mxu0 %v75
    %v201 = vpop.f32.mrf.mxu0
    %v202 = vadd.f32 %v95, %v201
    %v203 = vpop.f32.mrf.mxu0
    %v204 = vadd.f32 %v95, %v203
    %205 = vdwg.mxu0
    %v206 = vmax.f32 %v188, 0.0
    %v207 = vmax.f32 %v202, 0.0
    %v208 = vmax.f32 %v190, 0.0
    %v209 = vmax.f32 %v204, 0.0
    %v210 = vpack.c.bf16 %v208, %v206
    %v211 = vpack.c.bf16 %v209, %v207
    %v212 = vld [vmem:[#allocation4] sm:$0xff]
    %v213 = vld [vmem:[#allocation4 + $0x8] sm:$0xff]
    %v214 = vld [vmem:[#allocation4 + $0x10] sm:$0xff]
    %v215 = vld [vmem:[#allocation4 + $0x18] sm:$0xff]
    %v216 = vld [vmem:[#allocation4 + $0x20] sm:$0xff]
    %v217 = vld [vmem:[#allocation4 + $0x28] sm:$0xff]
    %v218 = vld [vmem:[#allocation4 + $0x30] sm:$0xff]
    %v219 = vld [vmem:[#allocation4 + $0x38] sm:$0xff]
    %v220 = vld [vmem:[#allocation4 + $0x40] sm:$0xff]
    %v221 = vld [vmem:[#allocation4 + $0x48] sm:$0xff]
    %v222 = vld [vmem:[#allocation4 + $0x50] sm:$0xff]
    %v223 = vld [vmem:[#allocation4 + $0x58] sm:$0xff]
    %v224 = vld [vmem:[#allocation4 + $0x60] sm:$0xff]
    %v225 = vld [vmem:[#allocation4 + $0x68] sm:$0xff]
    %v226 = vld [vmem:[#allocation4 + $0x70] sm:$0xff]
    %v227 = vld [vmem:[#allocation4 + $0x78] sm:$0xff]
    %v228 = vld [vmem:[#allocation4 + $0x80] sm:$0xff]
    %v229 = vld [vmem:[#allocation4 + $0x88] sm:$0xff]
    %v230 = vld [vmem:[#allocation4 + $0x90] sm:$0xff]
    %v231 = vld [vmem:[#allocation4 + $0x98] sm:$0xff]
    %v232 = vld [vmem:[#allocation4 + $0xa0] sm:$0xff]
    %v233 = vld [vmem:[#allocation4 + $0xa8] sm:$0xff]
    %v234 = vld [vmem:[#allocation4 + $0xb0] sm:$0xff]
    %v235 = vld [vmem:[#allocation4 + $0xb8] sm:$0xff]
    %v236 = vld [vmem:[#allocation4 + $0xc0] sm:$0xff]
    %v237 = vld [vmem:[#allocation4 + $0xc8] sm:$0xff]
    %v238 = vld [vmem:[#allocation4 + $0xd0] sm:$0xff]
    %v239 = vld [vmem:[#allocation4 + $0xd8] sm:$0xff]
    %v240 = vld [vmem:[#allocation4 + $0xe0] sm:$0xff]
    %v241 = vld [vmem:[#allocation4 + $0xe8] sm:$0xff]
    %v242 = vld [vmem:[#allocation4 + $0xf0] sm:$0xff]
    %v243 = vld [vmem:[#allocation4 + $0xf8] sm:$0xff]
    %v244 = vld [vmem:[%s4] sm:$0x3]
    %v246 = vperm.slane %v244, 0
    %v247 = vperm.slane %v244, 1
    %v282 = vunpack.c.l.b16 %v212
    %v283 = vunpack.c.h.b16 %v212
    %v284 = vunpack.c.l.b16 %v213
    %v285 = vunpack.c.h.b16 %v213
    %v286 = vunpack.c.l.b16 %v214
    %v287 = vunpack.c.h.b16 %v214
    %v288 = vunpack.c.l.b16 %v215
    %v289 = vunpack.c.h.b16 %v215
    %v290 = vunpack.c.l.b16 %v216
    %v291 = vunpack.c.h.b16 %v216
    %v292 = vunpack.c.l.b16 %v217
    %v293 = vunpack.c.h.b16 %v217
    %v294 = vunpack.c.l.b16 %v218
    %v295 = vunpack.c.h.b16 %v218
    %v296 = vunpack.c.l.b16 %v219
    %v297 = vunpack.c.h.b16 %v219
    %v298 = vunpack.c.l.b16 %v220
    %v299 = vunpack.c.h.b16 %v220
    %v300 = vunpack.c.l.b16 %v221
    %v301 = vunpack.c.h.b16 %v221
    %v302 = vunpack.c.l.b16 %v222
    %v303 = vunpack.c.h.b16 %v222
    %v304 = vunpack.c.l.b16 %v223
    %v305 = vunpack.c.h.b16 %v223
    %v306 = vunpack.c.l.b16 %v224
    %v307 = vunpack.c.h.b16 %v224
    %v308 = vunpack.c.l.b16 %v225
    %v309 = vunpack.c.h.b16 %v225
    %v310 = vunpack.c.l.b16 %v226
    %v311 = vunpack.c.h.b16 %v226
    %v312 = vunpack.c.l.b16 %v227
    %v313 = vunpack.c.h.b16 %v227
    %v314 = vunpack.c.l.b16 %v228
    %v315 = vunpack.c.h.b16 %v228
    %v316 = vunpack.c.l.b16 %v229
    %v317 = vunpack.c.h.b16 %v229
    %v318 = vunpack.c.l.b16 %v230
    %v319 = vunpack.c.h.b16 %v230
    %v320 = vunpack.c.l.b16 %v231
    %v321 = vunpack.c.h.b16 %v231
    %v322 = vunpack.c.l.b16 %v232
    %v323 = vunpack.c.h.b16 %v232
    %v324 = vunpack.c.l.b16 %v233
    %v325 = vunpack.c.h.b16 %v233
    %v326 = vunpack.c.l.b16 %v234
    %v327 = vunpack.c.h.b16 %v234
    %v328 = vunpack.c.l.b16 %v235
    %v329 = vunpack.c.h.b16 %v235
    %v330 = vunpack.c.l.b16 %v236
    %v331 = vunpack.c.h.b16 %v236
    %v332 = vunpack.c.l.b16 %v237
    %v333 = vunpack.c.h.b16 %v237
    %v334 = vunpack.c.l.b16 %v238
    %v335 = vunpack.c.h.b16 %v238
    %v336 = vunpack.c.l.b16 %v239
    %v337 = vunpack.c.h.b16 %v239
    %v338 = vunpack.c.l.b16 %v240
    %v339 = vunpack.c.h.b16 %v240
    %v340 = vunpack.c.l.b16 %v241
    %v341 = vunpack.c.h.b16 %v241
    %v342 = vunpack.c.l.b16 %v242
    %v343 = vunpack.c.h.b16 %v242
    %v344 = vunpack.c.l.b16 %v243
    %v345 = vunpack.c.h.b16 %v243
    %v346 = vpack.c.b16 %v284, %v282
    %v347 = vpack.c.b16 %v285, %v283
    %v348 = vpack.c.b16 %v288, %v286
    %v349 = vpack.c.b16 %v289, %v287
    %v350 = vpack.c.b16 %v292, %v290
    %v351 = vpack.c.b16 %v293, %v291
    %v352 = vpack.c.b16 %v296, %v294
    %v353 = vpack.c.b16 %v297, %v295
    %v354 = vpack.c.b16 %v300, %v298
    %v355 = vpack.c.b16 %v301, %v299
    %v356 = vpack.c.b16 %v304, %v302
    %v357 = vpack.c.b16 %v305, %v303
    %v358 = vpack.c.b16 %v308, %v306
    %v359 = vpack.c.b16 %v309, %v307
    %v360 = vpack.c.b16 %v312, %v310
    %v361 = vpack.c.b16 %v313, %v311
    %v362 = vpack.c.b16 %v316, %v314
    %v363 = vpack.c.b16 %v317, %v315
    %v364 = vpack.c.b16 %v320, %v318
    %v365 = vpack.c.b16 %v321, %v319
    %v366 = vpack.c.b16 %v324, %v322
    %v367 = vpack.c.b16 %v325, %v323
    %v368 = vpack.c.b16 %v328, %v326
    %v369 = vpack.c.b16 %v329, %v327
    %v370 = vpack.c.b16 %v332, %v330
    %v371 = vpack.c.b16 %v333, %v331
    %v372 = vpack.c.b16 %v336, %v334
    %v373 = vpack.c.b16 %v337, %v335
    %v374 = vpack.c.b16 %v340, %v338
    %v375 = vpack.c.b16 %v341, %v339
    %v376 = vpack.c.b16 %v344, %v342
    %v377 = vpack.c.b16 %v345, %v343
    %410 = vmatpush.bf16.msra.mxu0 %v360
    %411 = vmatpush.bf16.msra.mxu0 %v358
    %412 = vmatpush.bf16.msra.mxu0 %v356
    %413 = vmatpush.bf16.msra.mxu0 %v354
    %414 = vmatpush.bf16.msra.mxu0 %v352
    %415 = vmatpush.bf16.msra.mxu0 %v350
    %416 = vmatpush.bf16.msra.mxu0 %v348
    %417 = vmatpush.bf16.msra.mxu0 %v346
    %418 = vmatmul.bf16.gmra.mxu0 %v210
    %v419 = vpop.f32.mrf.mxu0
    %v420 = vadd.f32 %v246, %v419
    %v421 = vpop.f32.mrf.mxu0
    %v422 = vadd.f32 %v246, %v421
    %423 = vdwg.mxu0
    %424 = vmatpush.bf16.msra.mxu0 %v376
    %425 = vmatpush.bf16.msra.mxu0 %v374
    %426 = vmatpush.bf16.msra.mxu0 %v372
    %427 = vmatpush.bf16.msra.mxu0 %v370
    %428 = vmatpush.bf16.msra.mxu0 %v368
    %429 = vmatpush.bf16.msra.mxu0 %v366
    %430 = vmatpush.bf16.msra.mxu0 %v364
    %431 = vmatpush.bf16.msra.mxu0 %v362
    %432 = vmatmul.bf16.gmra.mxu0 %v211
    %v433 = vpop.f32.mrf.mxu0
    %v434 = vadd.f32 %v420, %v433
    %v435 = vpop.f32.mrf.mxu0
    %v436 = vadd.f32 %v422, %v435
    %437 = vdwg.mxu0
    %438 = vmatpush.bf16.msra.mxu0 %v361
    %439 = vmatpush.bf16.msra.mxu0 %v359
    %440 = vmatpush.bf16.msra.mxu0 %v357
    %441 = vmatpush.bf16.msra.mxu0 %v355
    %442 = vmatpush.bf16.msra.mxu0 %v353
    %443 = vmatpush.bf16.msra.mxu0 %v351
    %444 = vmatpush.bf16.msra.mxu0 %v349
    %445 = vmatpush.bf16.msra.mxu0 %v347
    %446 = vmatmul.bf16.gmra.mxu0 %v210
    %v447 = vpop.f32.mrf.mxu0
    %v448 = vadd.f32 %v247, %v447
    %v449 = vpop.f32.mrf.mxu0
    %v450 = vadd.f32 %v247, %v449
    %451 = vdwg.mxu0
    %452 = vmatpush.bf16.msra.mxu0 %v377
    %453 = vmatpush.bf16.msra.mxu0 %v375
    %454 = vmatpush.bf16.msra.mxu0 %v373
    %455 = vmatpush.bf16.msra.mxu0 %v371
    %456 = vmatpush.bf16.msra.mxu0 %v369
    %457 = vmatpush.bf16.msra.mxu0 %v367
    %458 = vmatpush.bf16.msra.mxu0 %v365
    %459 = vmatpush.bf16.msra.mxu0 %v363
    %460 = vmatmul.bf16.gmra.mxu0 %v211
    %v461 = vpop.f32.mrf.mxu0
    %v462 = vadd.f32 %v448, %v461
    %v463 = vpop.f32.mrf.mxu0
    %v464 = vadd.f32 %v450, %v463
    %465 = vdwg.mxu0
    %v466 = vmax.f32 %v434, 0.0
    %v467 = vmax.f32 %v462, 0.0
    %v468 = vmax.f32 %v436, 0.0
    %v469 = vmax.f32 %v464, 0.0
    %v470 = vpack.c.bf16 %v468, %v466
    %v471 = vpack.c.bf16 %v469, %v467
    %v472 = vld [vmem:[#allocation6] sm:$0xf]
    %v473 = vld [vmem:[#allocation6 + $0x4] sm:$0xf]
    %v474 = vld [vmem:[#allocation6 + $0x8] sm:$0xf]
    %v475 = vld [vmem:[#allocation6 + $0xc] sm:$0xf]
    %v476 = vld [vmem:[#allocation6 + $0x10] sm:$0xf]
    %v477 = vld [vmem:[#allocation6 + $0x14] sm:$0xf]
    %v478 = vld [vmem:[#allocation6 + $0x18] sm:$0xf]
    %v479 = vld [vmem:[#allocation6 + $0x1c] sm:$0xf]
    %v480 = vld [vmem:[#allocation6 + $0x20] sm:$0xf]
    %v481 = vld [vmem:[#allocation6 + $0x24] sm:$0xf]
    %v482 = vld [vmem:[#allocation6 + $0x28] sm:$0xf]
    %v483 = vld [vmem:[#allocation6 + $0x2c] sm:$0xf]
    %v484 = vld [vmem:[#allocation6 + $0x30] sm:$0xf]
    %v485 = vld [vmem:[#allocation6 + $0x34] sm:$0xf]
    %v486 = vld [vmem:[#allocation6 + $0x38] sm:$0xf]
    %v487 = vld [vmem:[#allocation6 + $0x3c] sm:$0xf]
    %v488 = vld [vmem:[#allocation6 + $0x40] sm:$0xf]
    %v489 = vld [vmem:[#allocation6 + $0x44] sm:$0xf]
    %v490 = vld [vmem:[#allocation6 + $0x48] sm:$0xf]
    %v491 = vld [vmem:[#allocation6 + $0x4c] sm:$0xf]
    %v492 = vld [vmem:[#allocation6 + $0x50] sm:$0xf]
    %v493 = vld [vmem:[#allocation6 + $0x54] sm:$0xf]
    %v494 = vld [vmem:[#allocation6 + $0x58] sm:$0xf]
    %v495 = vld [vmem:[#allocation6 + $0x5c] sm:$0xf]
    %v496 = vld [vmem:[#allocation6 + $0x60] sm:$0xf]
    %v497 = vld [vmem:[#allocation6 + $0x64] sm:$0xf]
    %v498 = vld [vmem:[#allocation6 + $0x68] sm:$0xf]
    %v499 = vld [vmem:[#allocation6 + $0x6c] sm:$0xf]
    %v500 = vld [vmem:[#allocation6 + $0x70] sm:$0xf]
    %v501 = vld [vmem:[#allocation6 + $0x74] sm:$0xf]
    %v502 = vld [vmem:[#allocation6 + $0x78] sm:$0xf]
    %v503 = vld [vmem:[#allocation6 + $0x7c] sm:$0xf]
    %v504 = vld [vmem:[%s6] sm:$0x1]
    %v506 = vperm.slane %v504, 0
    %v540 = vunpack.c.l.b16 %v472
    %v541 = vunpack.c.l.b16 %v473
    %v542 = vunpack.c.l.b16 %v474
    %v543 = vunpack.c.l.b16 %v475
    %v544 = vunpack.c.l.b16 %v476
    %v545 = vunpack.c.l.b16 %v477
    %v546 = vunpack.c.l.b16 %v478
    %v547 = vunpack.c.l.b16 %v479
    %v548 = vunpack.c.l.b16 %v480
    %v549 = vunpack.c.l.b16 %v481
    %v550 = vunpack.c.l.b16 %v482
    %v551 = vunpack.c.l.b16 %v483
    %v552 = vunpack.c.l.b16 %v484
    %v553 = vunpack.c.l.b16 %v485
    %v554 = vunpack.c.l.b16 %v486
    %v555 = vunpack.c.l.b16 %v487
    %v556 = vunpack.c.l.b16 %v488
    %v557 = vunpack.c.l.b16 %v489
    %v558 = vunpack.c.l.b16 %v490
    %v559 = vunpack.c.l.b16 %v491
    %v560 = vunpack.c.l.b16 %v492
    %v561 = vunpack.c.l.b16 %v493
    %v562 = vunpack.c.l.b16 %v494
    %v563 = vunpack.c.l.b16 %v495
    %v564 = vunpack.c.l.b16 %v496
    %v565 = vunpack.c.l.b16 %v497
    %v566 = vunpack.c.l.b16 %v498
    %v567 = vunpack.c.l.b16 %v499
    %v568 = vunpack.c.l.b16 %v500
    %v569 = vunpack.c.l.b16 %v501
    %v570 = vunpack.c.l.b16 %v502
    %v571 = vunpack.c.l.b16 %v503
    %v572 = vpack.c.b16 %v541, %v540
    %v573 = vpack.c.b16 %v543, %v542
    %v574 = vpack.c.b16 %v545, %v544
    %v575 = vpack.c.b16 %v547, %v546
    %v576 = vpack.c.b16 %v549, %v548
    %v577 = vpack.c.b16 %v551, %v550
    %v578 = vpack.c.b16 %v553, %v552
    %v579 = vpack.c.b16 %v555, %v554
    %v580 = vpack.c.b16 %v557, %v556
    %v581 = vpack.c.b16 %v559, %v558
    %v582 = vpack.c.b16 %v561, %v560
    %v583 = vpack.c.b16 %v563, %v562
    %v584 = vpack.c.b16 %v565, %v564
    %v585 = vpack.c.b16 %v567, %v566
    %v586 = vpack.c.b16 %v569, %v568
    %v587 = vpack.c.b16 %v571, %v570
    %604 = vmatpush.bf16.msra.mxu0 %v579
    %605 = vmatpush.bf16.msra.mxu0 %v578
    %606 = vmatpush.bf16.msra.mxu0 %v577
    %607 = vmatpush.bf16.msra.mxu0 %v576
    %608 = vmatpush.bf16.msra.mxu0 %v575
    %609 = vmatpush.bf16.msra.mxu0 %v574
    %610 = vmatpush.bf16.msra.mxu0 %v573
    %611 = vmatpush.bf16.msra.mxu0 %v572
    %612 = vmatmul.bf16.gmra.mxu0 %v470
    %v613 = vpop.f32.mrf.mxu0
    %v614 = vadd.f32 %v506, %v613
    %v615 = vpop.f32.mrf.mxu0
    %v616 = vadd.f32 %v506, %v615
    %617 = vdwg.mxu0
    %618 = vmatpush.bf16.msra.mxu0 %v587
    %619 = vmatpush.bf16.msra.mxu0 %v586
    %620 = vmatpush.bf16.msra.mxu0 %v585
    %621 = vmatpush.bf16.msra.mxu0 %v584
    %622 = vmatpush.bf16.msra.mxu0 %v583
    %623 = vmatpush.bf16.msra.mxu0 %v582
    %624 = vmatpush.bf16.msra.mxu0 %v581
    %625 = vmatpush.bf16.msra.mxu0 %v580
    %626 = vmatmul.bf16.gmra.mxu0 %v471
    %v627 = vpop.f32.mrf.mxu0
    %v628 = vadd.f32 %v614, %v627
    %v629 = vpop.f32.mrf.mxu0
    %v630 = vadd.f32 %v616, %v629
    %631 = vdwg.mxu0
    %632 = vst [vmem:[%s7] sm:$0xff] %v628
    %633 = vst [vmem:[%s7 + $0x8] sm:$0xff] %v630
    // Predicated region
    $region42: #{twitter_model_forward.1} parent=1 // pred_check
      _
    $region43: #{twitter_model_forward.1} parent=1 // pred_check_branch
      %635 = sbr.rel (0) target = $region45
    $region44: #{twitter_model_forward.1} parent=1 // pred_region
      _
    $region45: #{twitter_model_forward.1} parent=1 // pred_fallthru
      _
    // Predicated region
    $region46: #{twitter_model_forward.1} parent=1 // pred_check
      _
    $region47: #{twitter_model_forward.1} parent=1 // pred_check_branch
      %637 = sbr.rel (0) target = $region49
    $region48: #{twitter_model_forward.1} parent=1 // pred_region
      _
    $region49: #{twitter_model_forward.1} parent=1 // pred_fallthru
      _
    %638 = vsyncpa [#allocation3], 1
    %639 = vsyncpa [#allocation5], 1

</llo_original>
